<compile_context>
chip_gen: v7x
topology: tpu7x:2x2x1
jax: 0.10.0
libtpu: 0.0.40
codegen_flags: <defaults>
</compile_context>

<pallas_src>
import jax
import jax.numpy as jnp
from jax.experimental import pallas as pl
from jax.experimental.pallas import tpu as pltpu

LANES = 128
_TILE_BYTES = 2 << 20        # ~2 MiB per tile -> 4 live buffers (in+out, double
                             # buffered) stay well under scoped VMEM on v5e/v6e/v7x.
_WHOLE_BLOCK_BYTES = 2 << 20  # ragged inputs up to this size: single-block copy,
                              # no pad / no slice.


def _copy_kernel(x_ref, o_ref):
    # Identity copy of the current tile (the "view" itself has no math).
    o_ref[...] = x_ref[...]


def _sublane_multiple(dtype):
    """Packed sublane granularity: 8 rows for 32-bit, 16 for bf16, 32 for 8-bit."""
    itemsize = jnp.dtype(dtype).itemsize
    return max(8, 8 * (4 // max(itemsize, 1)))


def _resolve_shape(shape, numel):
    """Resolve a single -1 like torch.view does."""
    shape = list(shape)
    if shape.count(-1) > 1:
        raise ValueError("only one dimension can be inferred")
    if -1 in shape:
        known = 1
        for s in shape:
            if s != -1:
                known *= s
        if known == 0 or numel % known != 0:
            raise ValueError(
                f"shape {tuple(shape)} is invalid for input of size {numel}")
        shape[shape.index(-1)] = numel // known
    prod = 1
    for s in shape:
        prod *= s
    if prod != numel:
        raise ValueError(
            f"shape {tuple(shape)} is invalid for input of size {numel}")
    return tuple(shape)


def _pallas_copy_slab(slab, tile_rows):
    """Tiled, pipelined identity copy of a lane-dense (rows, 128) slab."""
    rows, lanes = slab.shape
    grid = (pl.cdiv(rows, tile_rows),)
    return pl.pallas_call(
        _copy_kernel,
        out_shape=jax.ShapeDtypeStruct((rows, lanes), slab.dtype),
        grid_spec=pltpu.PrefetchScalarGridSpec(
            num_scalar_prefetch=0,
            grid=grid,
            in_specs=[pl.BlockSpec((tile_rows, lanes), lambda i: (i, 0))],
            out_specs=pl.BlockSpec((tile_rows, lanes), lambda i: (i, 0)),
        ),
        compiler_params=pltpu.CompilerParams(
            # Copy has no cross-tile dependence; "parallel" lets v7x's two
            # TensorCores shard the tile loop (neutral on single-TC chips).
            dimension_semantics=("parallel",)),
    )(slab)


def _pallas_copy_whole_1d(flat):
    """Single-block identity copy of a small 1-D array (no pad, no slice)."""
    (n,) = flat.shape
    return pl.pallas_call(
        _copy_kernel,
        out_shape=jax.ShapeDtypeStruct((n,), flat.dtype),
        grid_spec=pltpu.PrefetchScalarGridSpec(
            num_scalar_prefetch=0,
            grid=(1,),
            # Block equals the full array extent, so the (8,128) divisibility
            # requirement does not apply.
            in_specs=[pl.BlockSpec((n,), lambda i: (0,))],
            out_specs=pl.BlockSpec((n,), lambda i: (0,)),
        ),
    )(flat)


def pallas_view(x, *shape):
    """Equivalent of torch.Tensor.view(*shape); the byte copy is done in Pallas."""
    numel = x.size
    target_shape = _resolve_shape(shape, numel)

    if numel == 0:
        # Nothing to copy — pure metadata.
        return jnp.reshape(x, target_shape)

    dtype = x.dtype
    sub = _sublane_multiple(dtype)
    itemsize = jnp.dtype(dtype).itemsize

    flat = x.reshape(-1)

    if numel % LANES == 0:
        # Fast path: lane-dense slab, no padding, no trailing slice.
        rows = numel // LANES
        # Tile rows: ~_TILE_BYTES per tile, rounded down to the packed-sublane
        # multiple so blocks stay unmasked full-(sub,128) tiles.
        tile_rows = max(sub, (_TILE_BYTES // (LANES * itemsize)) // sub * sub)
        slab = flat.reshape(rows, LANES)
        out_slab = _pallas_copy_slab(slab, min(tile_rows, rows))
        return out_slab.reshape(target_shape)

    if numel * itemsize <= _WHOLE_BLOCK_BYTES:
        # Small ragged input: single whole-array block, no pad / no slice.
        out_flat = _pallas_copy_whole_1d(flat)
        return out_flat.reshape(target_shape)

    # Large ragged input: pad up to a full lane-dense slab, copy, strip, reshape.
    rows = -(-numel // LANES)                 # ceil
    rows_padded = -(-rows // sub) * sub       # round up to packed sublane multiple
    padded_len = rows_padded * LANES
    flat = jnp.pad(flat, (0, padded_len - numel))
    slab = flat.reshape(rows_padded, LANES)
    tile_rows = max(sub, (_TILE_BYTES // (LANES * itemsize)) // sub * sub)
    out_slab = _pallas_copy_slab(slab, min(tile_rows, rows_padded))
    return out_slab.reshape(-1)[:numel].reshape(target_shape)


class View:
    """JAX/Pallas port of the PyTorch View module."""

    def __init__(self, *shape):
        self.shape = shape

    def __call__(self, input_tensor):
        return pallas_view(input_tensor, *self.shape)


if __name__ == "__main__":
    key = jax.random.PRNGKey(0)
    # Small NCHW-style input consistent with typical usage: (2, 4, 16, 16).
    x = jax.random.normal(key, (2, 4, 16, 16), dtype=jnp.float32)

    # View(2, -1): flatten everything but the batch dim (classifier-head style).
    view_mod = View(2, -1)
    out = view_mod(x)
    out = jax.block_until_ready(out)

    ref = x.reshape(2, -1)
    assert out.shape == (2, 4 * 16 * 16)
    assert out.dtype == x.dtype
    assert bool(jnp.array_equal(out, ref))

    # Exercise the small ragged (non-128-multiple, whole-block) path.
    y = jax.random.normal(jax.random.PRNGKey(1), (3, 5, 7), dtype=jnp.float32)
    out2 = jax.block_until_ready(View(-1, 7)(y))
    assert out2.shape == (15, 7)
    assert bool(jnp.array_equal(out2, y.reshape(-1, 7)))

    # Exercise a larger lane-aligned path with bf16 (packed sublane multiple).
    z = jax.random.normal(jax.random.PRNGKey(2), (4, 8, 32), dtype=jnp.bfloat16)
    out3 = jax.block_until_ready(View(4, -1)(z))
    assert out3.shape == (4, 8 * 32)
    assert bool(jnp.array_equal(out3, z.reshape(4, -1)))

    print("KERNEL_OK")
</pallas_src>

<mosaic_0001>
module attributes {stable_mosaic.version = 11 : i64} {
  func.func @_copy_kernel(%arg0: i32, %arg1: memref<16x128xf32, #tpu.memory_space<vmem>>, %arg2: memref<16x128xf32, #tpu.memory_space<vmem>>) attributes {dimension_semantics = [#tpu.dimension_semantics<parallel>], iteration_bounds = array<i64: 1>, scalar_prefetch = 0 : i64, scratch_operands = 0 : i64, tpu.core_type = #tpu.core_type<tc>, window_params = [{transform_indices = @transform_0, window_bounds = array<i64: 16, 128>}, {transform_indices = @transform_1, window_bounds = array<i64: 16, 128>}]} {
    %c0 = arith.constant 0 : index
    %c0_0 = arith.constant 0 : index
    %0 = vector.load %arg1[%c0, %c0_0] : memref<16x128xf32, #tpu.memory_space<vmem>>, vector<16x128xf32>
    %c0_1 = arith.constant 0 : index
    %c0_2 = arith.constant 0 : index
    %1 = vector.load %arg2[%c0_1, %c0_2] : memref<16x128xf32, #tpu.memory_space<vmem>>, vector<16x128xf32>
    tpu.vector_store %arg2[%c0_1, %c0_2], %0 {strides = array<i32>} : memref<16x128xf32, #tpu.memory_space<vmem>>, vector<16x128xf32>,
    return
  }
  func.func @transform_0(%arg0: i32) -> (i32, i32) {
    %c0_i32 = arith.constant 0 : i32
    %c0_i32_0 = arith.constant 0 : i32
    return %arg0, %c0_i32 : i32, i32
  }
  func.func @transform_1(%arg0: i32) -> (i32, i32) {
    %c0_i32 = arith.constant 0 : i32
    %c0_i32_0 = arith.constant 0 : i32
    return %arg0, %c0_i32 : i32, i32
  }
}

</mosaic_0001>

<llo_original>
// kernel: tpu_custom_call.1
$region0: #{tpu_custom_call.1}
  #allocation0 [shape = 'u32[]', space=smem, size = 0x4, offset = 0x4, fixed_abs, tag = 'smem constant byte address 0x4 - core index']
  #allocation1 [shape = 'u32[144,128]{1,0:T(1,128)}', space=vmem, size = 0x12000, scoped, tag = 'internal scratch']
  %s0 = inlined_call_operand.hbm [shape: f32[16,128], index: 0, kind: input, shape index: {}]
  %s1 = inlined_call_operand.hbm [shape: f32[16,128], index: 1, kind: output, shape index: {}]
  %s2 = sld [smem:[#allocation0]]
  $region18: #{tpu_custom_call.1} parent=0
    _
  %s4 = ssub.s32 1, %s2
  %s5 = scalar_select 0, %s4, %s2
  $region1: #{tpu_custom_call.1} parent=0
    #allocation2 [shape = 'u8[8192]{0}', space=vmem, size = 0x2000, scoped, tag = 'input window, operand 0, single buffered']
    #allocation3 [shape = 's32[1]{0}', space=sflag, size = 0x4, scoped, tag = 'scoped memory for tpu_custom_call.1']
    #allocation4 [shape = 's32[1]{0}', space=sflag, size = 0x4, scoped, tag = 'scoped memory for tpu_custom_call.1']
    #allocation5 [shape = 'u8[8192]{0}', space=vmem, size = 0x2000, scoped, tag = 'output window, operand 0, single buffered']
    %6 = vsyncpa [#allocation3], 0
    %7 = vsyncpa [#allocation4], 0
    // Predicated region
    $region2: #{tpu_custom_call.1} parent=1 // pred_check
      _
    $region3: #{tpu_custom_call.1} parent=1 // pred_check_branch
      %9 = sbr.rel (0) target = $region5
    $region4: #{tpu_custom_call.1} parent=1 // pred_region
      %s11 = ssub.s32 256, 256
      %12 = vsyncadd [#allocation3], %s11
      %s13 = sshll.u32 [#allocation2], 4
      %s14 = int_to_ptr.vmem [resolvable:$true] %s13
      %19 = dma.hbm_to_vmem [thread:$0]  %s0, 256, %s14, [#allocation3], 128, 128, 8
    $region5: #{tpu_custom_call.1} parent=1 // pred_fallthru
      _
    // Predicated region
    $region6: #{tpu_custom_call.1} parent=1 // pred_check
      _
    $region7: #{tpu_custom_call.1} parent=1 // pred_check_branch
      %21 = sbr.rel (0) target = $region9
    $region8: #{tpu_custom_call.1} parent=1 // pred_region
      %22 = dma.done [#allocation3], 256
    $region9: #{tpu_custom_call.1} parent=1 // pred_fallthru
      _
    %v23 = vld [vmem:[#allocation2] sm:$0xff]
    %v24 = vld [vmem:[#allocation2 + $0x8] sm:$0xff]
    %25 = vst [vmem:[#allocation5] sm:$0xff] %v23
    %26 = vst [vmem:[#allocation5 + $0x8] sm:$0xff] %v24
    // Predicated region
    $region10: #{tpu_custom_call.1} parent=1 // pred_check
      _
    $region11: #{tpu_custom_call.1} parent=1 // pred_check_branch
      %28 = sbr.rel (0) target = $region13
    $region12: #{tpu_custom_call.1} parent=1 // pred_region
      %s30 = ssub.s32 256, 256
      %31 = vsyncadd [#allocation4], %s30
      %s32 = sshll.u32 [#allocation5], 4
      %s33 = int_to_ptr.vmem [resolvable:$true] %s32
      %38 = dma.vmem_to_hbm [thread:$0]  %s33, 256, %s1, [#allocation4], 128, 128, 8
    $region13: #{tpu_custom_call.1} parent=1 // pred_fallthru
      _
    // Predicated region
    $region14: #{tpu_custom_call.1} parent=1 // pred_check
      _
    $region15: #{tpu_custom_call.1} parent=1 // pred_check_branch
      %40 = sbr.rel (0) target = $region17
    $region16: #{tpu_custom_call.1} parent=1 // pred_region
      %41 = dma.done [#allocation4], 256
    $region17: #{tpu_custom_call.1} parent=1 // pred_fallthru
      _
    %42 = vsyncpa [#allocation3], 1
    %43 = vsyncpa [#allocation4], 1

</llo_original>
